<compile_context>
chip_gen: v6e
topology: v6e:2x2x1
jax: 0.10.0
libtpu: 0.0.40
codegen_flags: <defaults>
</compile_context>

<pallas_src>
import jax
import jax.numpy as jnp
from jax.experimental import pallas as pl
from jax.experimental.pallas import tpu as pltpu

IN_DIM = 100
HID_DIM = 16
OUT_DIM = 4


def head_kernel(x_ref, w1_ref, b1_ref, w2_ref, b2_ref, o_ref):
    # x:  (TILE_B, 100) bf16   w1: (100, 16) bf16   b1: (1, 16) f32
    # w2: (16, 4) f32          b2: (1, 4) f32       o:  (TILE_B, 4) f32
    h = jnp.dot(x_ref[...], w1_ref[...], preferred_element_type=jnp.float32)
    h = jnp.maximum(h + b1_ref[...], 0.0)                       # bias + ReLU in f32
    out = jnp.dot(h, w2_ref[...], preferred_element_type=jnp.float32) + b2_ref[...]
    o_ref[...] = out.astype(o_ref.dtype)


def head_forward(x, w1, b1, w2, b2, *, tile_b=1024):
    """x: (B, 100) f32.  w1: (100,16), b1: (16,), w2: (16,4), b2: (4,) -- all f32."""
    B = x.shape[0]

    # Memory-bound kernel: halve HBM traffic for x (and w1) via bf16; MXU
    # consumes bf16 natively on v5e/v6e/v7x and accumulates in f32.
    x_bf16 = x.astype(jnp.bfloat16)
    w1_bf16 = w1.astype(jnp.bfloat16)
    b1_2d = b1.reshape(1, HID_DIM).astype(jnp.float32)
    b2_2d = b2.reshape(1, OUT_DIM).astype(jnp.float32)

    if B <= tile_b:
        tile_b = B                       # single full-extent block (exempt from 8-row rule)
    else:
        tile_b = ((tile_b + 15) // 16) * 16  # keep sublane-aligned for bf16 packing
    num_tiles = pl.cdiv(B, tile_b)

    # Advisory cost estimate for XLA's scheduler around this custom call.
    flops = 2 * B * (IN_DIM * HID_DIM + HID_DIM * OUT_DIM)
    bytes_accessed = (
        B * IN_DIM * 2                       # x (bf16)
        + B * OUT_DIM * 4                    # output (f32)
        + IN_DIM * HID_DIM * 2               # w1 (bf16)
        + HID_DIM * 4                        # b1
        + HID_DIM * OUT_DIM * 4              # w2
        + OUT_DIM * 4                        # b2
    )

    return pl.pallas_call(
        head_kernel,
        out_shape=jax.ShapeDtypeStruct((B, OUT_DIM), jnp.float32),
        grid_spec=pltpu.PrefetchScalarGridSpec(
            num_scalar_prefetch=0,
            grid=(num_tiles,),
            in_specs=[
                pl.BlockSpec((tile_b, IN_DIM), lambda i: (i, 0)),     # x tile (pipelined)
                pl.BlockSpec((IN_DIM, HID_DIM), lambda i: (0, 0)),    # w1 (resident)
                pl.BlockSpec((1, HID_DIM), lambda i: (0, 0)),         # b1 (resident)
                pl.BlockSpec((HID_DIM, OUT_DIM), lambda i: (0, 0)),   # w2 (resident)
                pl.BlockSpec((1, OUT_DIM), lambda i: (0, 0)),         # b2 (resident)
            ],
            out_specs=pl.BlockSpec((tile_b, OUT_DIM), lambda i: (i, 0)),
        ),
        compiler_params=pltpu.CompilerParams(
            dimension_semantics=("parallel",)),   # v7x: shard batch tiles across both TCs
        cost_estimate=pl.CostEstimate(
            flops=flops, transcendentals=0, bytes_accessed=bytes_accessed),
    )(x_bf16, w1_bf16, b1_2d, w2, b2_2d)
    # Note: at genuinely tiny B (e.g. B=8 online inference) a plain fused XLA
    # matmul is at least as fast -- this kernel pays off for B in the hundreds+.


def init_params(key):
    """Deterministic PyTorch-style init: U(-1/sqrt(fan_in), 1/sqrt(fan_in))."""
    k1, k2, k3, k4 = jax.random.split(key, 4)
    lim1 = 1.0 / jnp.sqrt(float(IN_DIM))
    lim2 = 1.0 / jnp.sqrt(float(HID_DIM))
    # stored as (in, out) so the kernel can do x @ W directly
    w1 = jax.random.uniform(k1, (IN_DIM, HID_DIM), jnp.float32, -lim1, lim1)
    b1 = jax.random.uniform(k2, (HID_DIM,), jnp.float32, -lim1, lim1)
    w2 = jax.random.uniform(k3, (HID_DIM, OUT_DIM), jnp.float32, -lim2, lim2)
    b2 = jax.random.uniform(k4, (OUT_DIM,), jnp.float32, -lim2, lim2)
    return w1, b1, w2, b2


if __name__ == "__main__":
    key = jax.random.PRNGKey(0)
    kx1, kx2, kp = jax.random.split(key, 3)
    w1, b1, w2, b2 = init_params(kp)

    def ref_fn(x):
        # same bf16 quantization of x/w1 as the kernel, accumulation in f32
        xb = x.astype(jnp.bfloat16).astype(jnp.float32)
        w1b = w1.astype(jnp.bfloat16).astype(jnp.float32)
        return jnp.maximum(xb @ w1b + b1, 0.0) @ w2 + b2

    # Case 1: tiny batch -> single full-extent block
    x_small = jax.random.normal(kx1, (8, IN_DIM), jnp.float32)
    out_small = jax.block_until_ready(head_forward(x_small, w1, b1, w2, b2))
    assert out_small.shape == (8, OUT_DIM)
    assert jnp.allclose(out_small, ref_fn(x_small), atol=1e-3, rtol=1e-3)

    # Case 2: batch grid with a partial last tile (40 rows, 16-row tiles -> 3 steps)
    x_grid = jax.random.normal(kx2, (40, IN_DIM), jnp.float32)
    out_grid = jax.block_until_ready(
        head_forward(x_grid, w1, b1, w2, b2, tile_b=16))
    assert out_grid.shape == (40, OUT_DIM)
    assert jnp.allclose(out_grid, ref_fn(x_grid), atol=1e-3, rtol=1e-3)

    print("KERNEL_OK")
</pallas_src>

<mosaic_0001>
module attributes {stable_mosaic.version = 11 : i64} {
  func.func @head_kernel(%arg0: i32, %arg1: memref<8x100xbf16, #tpu.memory_space<vmem>>, %arg2: memref<100x16xbf16, #tpu.memory_space<vmem>>, %arg3: memref<1x16xf32, #tpu.memory_space<vmem>>, %arg4: memref<16x4xf32, #tpu.memory_space<vmem>>, %arg5: memref<1x4xf32, #tpu.memory_space<vmem>>, %arg6: memref<8x4xf32, #tpu.memory_space<vmem>>) attributes {dimension_semantics = [#tpu.dimension_semantics<parallel>], iteration_bounds = array<i64: 1>, scalar_prefetch = 0 : i64, scratch_operands = 0 : i64, tpu.core_type = #tpu.core_type<tc>, window_params = [{transform_indices = @transform_0, window_bounds = array<i64: 8, 100>}, {pipeline_mode = #tpu.pipeline_mode<synchronous>, transform_indices = @transform_1, window_bounds = array<i64: 100, 16>}, {pipeline_mode = #tpu.pipeline_mode<synchronous>, transform_indices = @transform_2, window_bounds = array<i64: 1, 16>}, {pipeline_mode = #tpu.pipeline_mode<synchronous>, transform_indices = @transform_3, window_bounds = array<i64: 16, 4>}, {pipeline_mode = #tpu.pipeline_mode<synchronous>, transform_indices = @transform_4, window_bounds = array<i64: 1, 4>}, {transform_indices = @transform_5, window_bounds = array<i64: 8, 4>}]} {
    %c0 = arith.constant 0 : index
    %c0_0 = arith.constant 0 : index
    %0 = vector.load %arg1[%c0, %c0_0] : memref<8x100xbf16, #tpu.memory_space<vmem>>, vector<8x100xbf16>
    %c0_1 = arith.constant 0 : index
    %c0_2 = arith.constant 0 : index
    %1 = vector.load %arg2[%c0_1, %c0_2] : memref<100x16xbf16, #tpu.memory_space<vmem>>, vector<100x16xbf16>
    %cst = arith.constant dense<0.000000e+00> : vector<8x16xf32>
    %2 = tpu.matmul %0, %1, %cst {dimension_numbers = #tpu.dot_dimension_numbers<[1], [0], [0], [1], [0, 0, 1, 1], [], []>} : vector<8x100xbf16>, vector<100x16xbf16>, vector<8x16xf32> -> vector<8x16xf32>
    %c0_3 = arith.constant 0 : index
    %c0_4 = arith.constant 0 : index
    %3 = vector.load %arg3[%c0_3, %c0_4] : memref<1x16xf32, #tpu.memory_space<vmem>>, vector<1x16xf32>
    %4 = vector.broadcast %3 : vector<1x16xf32> to vector<8x16xf32>
    %5 = arith.addf %2, %4 : vector<8x16xf32>
    %cst_5 = arith.constant 0.000000e+00 : f32
    %6 = vector.broadcast %cst_5 : f32 to vector<8x16xf32>
    %7 = arith.maximumf %5, %6 : vector<8x16xf32>
    %c0_6 = arith.constant 0 : index
    %c0_7 = arith.constant 0 : index
    %8 = vector.load %arg4[%c0_6, %c0_7] : memref<16x4xf32, #tpu.memory_space<vmem>>, vector<16x4xf32>
    %cst_8 = arith.constant dense<0.000000e+00> : vector<8x4xf32>
    %9 = tpu.matmul %7, %8, %cst_8 {dimension_numbers = #tpu.dot_dimension_numbers<[1], [0], [0], [1], [0, 0, 1, 1], [], []>} : vector<8x16xf32>, vector<16x4xf32>, vector<8x4xf32> -> vector<8x4xf32>
    %c0_9 = arith.constant 0 : index
    %c0_10 = arith.constant 0 : index
    %10 = vector.load %arg5[%c0_9, %c0_10] : memref<1x4xf32, #tpu.memory_space<vmem>>, vector<1x4xf32>
    %11 = vector.broadcast %10 : vector<1x4xf32> to vector<8x4xf32>
    %12 = arith.addf %9, %11 : vector<8x4xf32>
    %c0_11 = arith.constant 0 : index
    %c0_12 = arith.constant 0 : index
    %13 = vector.load %arg6[%c0_11, %c0_12] : memref<8x4xf32, #tpu.memory_space<vmem>>, vector<8x4xf32>
    tpu.vector_store %arg6[%c0_11, %c0_12], %12 {strides = array<i32>} : memref<8x4xf32, #tpu.memory_space<vmem>>, vector<8x4xf32>,
    return
  }
  func.func @transform_0(%arg0: i32) -> (i32, i32) {
    %c0_i32 = arith.constant 0 : i32
    %c0_i32_0 = arith.constant 0 : i32
    return %arg0, %c0_i32 : i32, i32
  }
  func.func @transform_1(%arg0: i32) -> (i32, i32) {
    %c0_i32 = arith.constant 0 : i32
    %c0_i32_0 = arith.constant 0 : i32
    %c0_i32_1 = arith.constant 0 : i32
    return %c0_i32, %c0_i32_0 : i32, i32
  }
  func.func @transform_2(%arg0: i32) -> (i32, i32) {
    %c0_i32 = arith.constant 0 : i32
    %c0_i32_0 = arith.constant 0 : i32
    %c0_i32_1 = arith.constant 0 : i32
    return %c0_i32, %c0_i32_0 : i32, i32
  }
  func.func @transform_3(%arg0: i32) -> (i32, i32) {
    %c0_i32 = arith.constant 0 : i32
    %c0_i32_0 = arith.constant 0 : i32
    %c0_i32_1 = arith.constant 0 : i32
    return %c0_i32, %c0_i32_0 : i32, i32
  }
  func.func @transform_4(%arg0: i32) -> (i32, i32) {
    %c0_i32 = arith.constant 0 : i32
    %c0_i32_0 = arith.constant 0 : i32
    %c0_i32_1 = arith.constant 0 : i32
    return %c0_i32, %c0_i32_0 : i32, i32
  }
  func.func @transform_5(%arg0: i32) -> (i32, i32) {
    %c0_i32 = arith.constant 0 : i32
    %c0_i32_0 = arith.constant 0 : i32
    return %arg0, %c0_i32 : i32, i32
  }
}

</mosaic_0001>

<llo_original>
// kernel: tpu_custom_call.1
$region0: #{tpu_custom_call.1}
  #allocation0 [shape = 'u32[]', space=smem, size = 0x4, offset = 0x4, fixed_abs, tag = 'smem constant byte address 0x4 - core index']
  #allocation1 [shape = 'u32[144,128]{1,0:T(1,128)}', space=vmem, size = 0x12000, scoped, tag = 'internal scratch']
  %s0 = inlined_call_operand.vmem [shape: bf16[8,100], index: 0, kind: input, shape index: {}]
  %s1 = inlined_call_operand.vmem [shape: bf16[100,16], index: 1, kind: input, shape index: {}]
  %s2 = inlined_call_operand.vmem [shape: f32[1,16], index: 2, kind: input, shape index: {}]
  %s3 = inlined_call_operand.vmem [shape: f32[16,4], index: 3, kind: input, shape index: {}]
  %s4 = inlined_call_operand.vmem [shape: f32[1,4], index: 4, kind: input, shape index: {}]
  %s5 = inlined_call_operand.vmem [shape: f32[8,4], index: 5, kind: output, shape index: {}]
  %s6 = sld [smem:[#allocation0]]
  $region30: #{tpu_custom_call.1} parent=0
    _
  %s8 = ssub.s32 1, %s6
  %s9 = scalar_select 0, %s8, %s6
  // Predicated region
  $region2: #{tpu_custom_call.1} parent=0 // pred_check
    _
  $region3: #{tpu_custom_call.1} parent=0 // pred_check_branch
    %11 = sbr.rel (0) target = $region5
  $region4: #{tpu_custom_call.1} parent=0 // pred_region
    _
  $region5: #{tpu_custom_call.1} parent=0 // pred_fallthru
    _
  // Predicated region
  $region6: #{tpu_custom_call.1} parent=0 // pred_check
    _
  $region7: #{tpu_custom_call.1} parent=0 // pred_check_branch
    %13 = sbr.rel (0) target = $region9
  $region8: #{tpu_custom_call.1} parent=0 // pred_region
    _
  $region9: #{tpu_custom_call.1} parent=0 // pred_fallthru
    _
  // Predicated region
  $region10: #{tpu_custom_call.1} parent=0 // pred_check
    _
  $region11: #{tpu_custom_call.1} parent=0 // pred_check_branch
    %15 = sbr.rel (0) target = $region13
  $region12: #{tpu_custom_call.1} parent=0 // pred_region
    _
  $region13: #{tpu_custom_call.1} parent=0 // pred_fallthru
    _
  // Predicated region
  $region14: #{tpu_custom_call.1} parent=0 // pred_check
    _
  $region15: #{tpu_custom_call.1} parent=0 // pred_check_branch
    %17 = sbr.rel (0) target = $region17
  $region16: #{tpu_custom_call.1} parent=0 // pred_region
    _
  $region17: #{tpu_custom_call.1} parent=0 // pred_fallthru
    _
  // Predicated region
  $region18: #{tpu_custom_call.1} parent=0 // pred_check
    _
  $region19: #{tpu_custom_call.1} parent=0 // pred_check_branch
    %19 = sbr.rel (0) target = $region21
  $region20: #{tpu_custom_call.1} parent=0 // pred_region
    _
  $region21: #{tpu_custom_call.1} parent=0 // pred_fallthru
    _
  %v21 = vld [vmem:[%s0] sm:$0xf]
  %v22 = vld [vmem:[%s1] sm:$0xf]
  %v23 = vld [vmem:[%s1 + $0x4] sm:$0xf]
  %v24 = vld [vmem:[%s1 + $0x8] sm:$0xf]
  %v25 = vld [vmem:[%s1 + $0xc] sm:$0xf]
  %v26 = vld [vmem:[%s1 + $0x10] sm:$0xf]
  %v27 = vld [vmem:[%s1 + $0x14] sm:$0xf]
  %v28 = vld [vmem:[%s1 + $0x18] sm:$0xf]
  %v29 = vld [vmem:[%s1 + $0x1c] sm:$0xf]
  %v30 = vld [vmem:[%s1 + $0x20] sm:$0xf]
  %v31 = vld [vmem:[%s1 + $0x24] sm:$0xf]
  %v32 = vld [vmem:[%s1 + $0x28] sm:$0xf]
  %v33 = vld [vmem:[%s1 + $0x2c] sm:$0xf]
  %v34 = vld [vmem:[%s1 + $0x30] sm:$0x3]
  %v35 = vld [vmem:[%s2] sm:$0x1]
  %v37 = vlaneseq
  %v38 = vshrl.u32 %v37, 7
  %v39 = vsub.s32 0, %v38
  %v40 = vrot.slane %v35, %v39
  %v55 = vunpack.c.l.b16 %v22
  %v56 = vunpack.c.l.b16 %v23
  %v57 = vunpack.c.l.b16 %v24
  %v58 = vunpack.c.l.b16 %v25
  %v59 = vunpack.c.l.b16 %v26
  %v60 = vunpack.c.l.b16 %v27
  %v61 = vunpack.c.l.b16 %v28
  %v62 = vunpack.c.l.b16 %v29
  %v63 = vunpack.c.l.b16 %v30
  %v64 = vunpack.c.l.b16 %v31
  %v65 = vunpack.c.l.b16 %v32
  %v66 = vunpack.c.l.b16 %v33
  %v67 = vunpack.c.l.b16 %v34
  %v68 = vpack.c.b16 %v56, %v55
  %v69 = vpack.c.b16 %v58, %v57
  %v70 = vpack.c.b16 %v60, %v59
  %v71 = vpack.c.b16 %v62, %v61
  %v72 = vpack.c.b16 %v64, %v63
  %v73 = vpack.c.b16 %v66, %v65
  %v74 = vpack.c.b16 %v67, %v67
  %vm81 = vcmask 818176
  %v83 = vsel %vm81, %v21, 0
  %vm85 = vcmask 1041408
  %v87 = vsel %vm85, %v74, 0
  %89 = vmatprep.subr.bf16.mxu0 0
  %90 = vmatpush1.bf16.msra.mxu0 0
  %91 = vmatprep.subr.bf16.mxu0 0
  %92 = vmatpush1.bf16.msra.mxu0 %v87
  %93 = vmatprep.subr.bf16.mxu0 0
  %94 = vmatpush1.bf16.msra.mxu0 %v73
  %95 = vmatprep.subr.bf16.mxu0 0
  %96 = vmatpush1.bf16.msra.mxu0 %v72
  %97 = vmatprep.subr.bf16.mxu0 0
  %98 = vmatpush1.bf16.msra.mxu0 %v71
  %99 = vmatprep.subr.bf16.mxu0 0
  %100 = vmatpush1.bf16.msra.mxu0 %v70
  %101 = vmatprep.subr.bf16.mxu0 0
  %102 = vmatpush1.bf16.msra.mxu0 %v69
  %103 = vmatprep.subr.bf16.mxu0 0
  %104 = vmatpush1.bf16.msra.mxu0 %v68
  %105 = vmatprep.subr.bf16.mxu0 0
  %106 = vmatpush2.bf16.msra.mxu0 0
  %107 = vmatprep.subr.bf16.mxu0 0
  %108 = vmatpush2.bf16.msra.mxu0 0
  %109 = vmatprep.subr.bf16.mxu0 0
  %110 = vmatpush2.bf16.msra.mxu0 0
  %111 = vmatprep.subr.bf16.mxu0 0
  %112 = vmatpush2.bf16.msra.mxu0 0
  %113 = vmatprep.subr.bf16.mxu0 0
  %114 = vmatpush2.bf16.msra.mxu0 0
  %115 = vmatprep.subr.bf16.mxu0 0
  %116 = vmatpush2.bf16.msra.mxu0 0
  %117 = vmatprep.subr.bf16.mxu0 0
  %118 = vmatpush2.bf16.msra.mxu0 0
  %119 = vmatprep.subr.bf16.mxu0 0
  %120 = vmatpush2.bf16.msra.mxu0 0
  %121 = vmatprep.mubr.bf16.mxu0 0
  %122 = vmatmul.mubr.bf16.gmra.mxu0 %v83
  %v123 = vpop.f32.mrf.mxu0
  %v124 = vadd.f32 %v40, %v123
  %v125 = vpop.f32.mrf.mxu0
  %v126 = vpop.f32.mrf.mxu0
  %v127 = vpop.f32.mrf.mxu0
  %128 = vdwg.mxu0
  %v129 = vmax.f32 %v124, 0.0
  %v130 = vld [vmem:[%s3] sm:$0xff]
  %v131 = vld [vmem:[%s3 + $0x8] sm:$0xff]
  %v132 = vld [vmem:[%s4] sm:$0x1]
  %v134 = vlaneseq
  %v135 = vshrl.u32 %v134, 7
  %v136 = vsub.s32 0, %v135
  %v137 = vrot.slane %v132, %v136
  %vm139 = vcmask 130048
  %v141 = vsel %vm139, %v129, 0
  %143 = vmatprep.subr.mxu0 0.0
  %144 = vmatpush1.msra.mxu0 0.0
  %145 = vmatprep.subr.mxu0 0.0
  %146 = vmatpush1.msra.mxu0 0.0
  %147 = vmatprep.subr.mxu0 0.0
  %148 = vmatpush1.msra.mxu0 0.0
  %149 = vmatprep.subr.mxu0 0.0
  %150 = vmatpush1.msra.mxu0 0.0
  %151 = vmatprep.subr.mxu0 0.0
  %152 = vmatpush1.msra.mxu0 0.0
  %153 = vmatprep.subr.mxu0 0.0
  %154 = vmatpush1.msra.mxu0 0.0
  %155 = vmatprep.subr.mxu0 0.0
  %156 = vmatpush1.msra.mxu0 0.0
  %157 = vmatprep.subr.mxu0 0.0
  %158 = vmatpush1.msra.mxu0 0.0
  %159 = vmatprep.subr.mxu0 0.0
  %160 = vmatpush1.msra.mxu0 0.0
  %161 = vmatprep.subr.mxu0 0.0
  %162 = vmatpush1.msra.mxu0 0.0
  %163 = vmatprep.subr.mxu0 0.0
  %164 = vmatpush1.msra.mxu0 0.0
  %165 = vmatprep.subr.mxu0 0.0
  %166 = vmatpush1.msra.mxu0 0.0
  %167 = vmatprep.subr.mxu0 0.0
  %168 = vmatpush1.msra.mxu0 0.0
  %169 = vmatprep.subr.mxu0 0.0
  %170 = vmatpush1.msra.mxu0 0.0
  %171 = vmatprep.subr.mxu0 0.0
  %172 = vmatpush1.msra.mxu0 %v131
  %173 = vmatprep.subr.mxu0 0.0
  %174 = vmatpush1.msra.mxu0 %v130
  %175 = vmatprep.subr.mxu0 0.0
  %176 = vmatpush2.msra.mxu0 0.0
  %177 = vmatprep.subr.mxu0 0.0
  %178 = vmatpush2.msra.mxu0 0.0
  %179 = vmatprep.subr.mxu0 0.0
  %180 = vmatpush2.msra.mxu0 0.0
  %181 = vmatprep.subr.mxu0 0.0
  %182 = vmatpush2.msra.mxu0 0.0
  %183 = vmatprep.subr.mxu0 0.0
  %184 = vmatpush2.msra.mxu0 0.0
  %185 = vmatprep.subr.mxu0 0.0
  %186 = vmatpush2.msra.mxu0 0.0
  %187 = vmatprep.subr.mxu0 0.0
  %188 = vmatpush2.msra.mxu0 0.0
  %189 = vmatprep.subr.mxu0 0.0
  %190 = vmatpush2.msra.mxu0 0.0
  %191 = vmatprep.subr.mxu0 0.0
  %192 = vmatpush2.msra.mxu0 0.0
  %193 = vmatprep.subr.mxu0 0.0
  %194 = vmatpush2.msra.mxu0 0.0
  %195 = vmatprep.subr.mxu0 0.0
  %196 = vmatpush2.msra.mxu0 0.0
  %197 = vmatprep.subr.mxu0 0.0
  %198 = vmatpush2.msra.mxu0 0.0
  %199 = vmatprep.subr.mxu0 0.0
  %200 = vmatpush2.msra.mxu0 0.0
  %201 = vmatprep.subr.mxu0 0.0
  %202 = vmatpush2.msra.mxu0 0.0
  %203 = vmatprep.subr.mxu0 0.0
  %204 = vmatpush2.msra.mxu0 0.0
  %205 = vmatprep.subr.mxu0 0.0
  %206 = vmatpush2.msra.mxu0 0.0
  %207 = vmatprep.mubr.f32.mxu0 0.0
  %208 = vmatmul.mubr.f32.gmra.mxu0 %v141
  %v209 = vpop.f32.mrf.mxu0
  %v210 = vadd.f32 %v137, %v209
  %v211 = vpop.f32.mrf.mxu0
  %212 = vdwg.mxu0
  %vm213 = vcmask 31744
  %214 = vst.msk [vmem:[%s5] sm:$0xff] %vm213, %v210
  // Predicated region
  $region22: #{tpu_custom_call.1} parent=0 // pred_check
    _
  $region23: #{tpu_custom_call.1} parent=0 // pred_check_branch
    %216 = sbr.rel (0) target = $region25
  $region24: #{tpu_custom_call.1} parent=0 // pred_region
    _
  $region25: #{tpu_custom_call.1} parent=0 // pred_fallthru
    _
  // Predicated region
  $region26: #{tpu_custom_call.1} parent=0 // pred_check
    _
  $region27: #{tpu_custom_call.1} parent=0 // pred_check_branch
    %218 = sbr.rel (0) target = $region29
  $region28: #{tpu_custom_call.1} parent=0 // pred_region
    _
  $region29: #{tpu_custom_call.1} parent=0 // pred_fallthru
    _

</llo_original>
